<compile_context>
chip_gen: v7x
topology: tpu7x:2x2x1
jax: 0.10.0
libtpu: 0.0.40
codegen_flags: <defaults>
</compile_context>

<pallas_src>
import functools

import jax
import jax.numpy as jnp
from jax.experimental import pallas as pl
from jax.experimental.pallas import tpu as pltpu

LN_EPS = 1e-5          # torch.nn.LayerNorm default
LEAKY_SLOPE = 0.01     # torch.nn.LeakyReLU default


def _round_up(x, m):
    return ((x + m - 1) // m) * m


def _layer_norm(h):
    # Centered two-pass formulation (matches PyTorch; no catastrophic
    # cancellation). Biased variance, as torch.nn.LayerNorm uses.
    mean = jnp.mean(h, axis=-1, keepdims=True)
    c = h - mean
    var = jnp.mean(c * c, axis=-1, keepdims=True)
    return c * jax.lax.rsqrt(var + LN_EPS)


def _leaky_relu(h):
    return jnp.where(h >= 0, h, LEAKY_SLOPE * h)


def acc_lib_size_encoder_kernel(z_ref, w1_ref, b1_ref, w2_ref, b2_ref,
                                w3_ref, b3_ref, o_ref):
    mm_dtype = w1_ref.dtype

    # z arrives in f32; cast to the MXU operand dtype in-kernel (no-op if f32).
    z = z_ref[...].astype(mm_dtype)

    # FC layer 1: Linear -> LayerNorm -> LeakyReLU  (dropout_rate=0 -> no-op)
    h = jnp.dot(z, w1_ref[...], preferred_element_type=jnp.float32)
    h = h + b1_ref[...]
    h = _leaky_relu(_layer_norm(h))

    # FC layer 2: Linear -> LayerNorm -> LeakyReLU
    h = jnp.dot(h.astype(mm_dtype), w2_ref[...],
                preferred_element_type=jnp.float32)
    h = h + b2_ref[...]
    h = _leaky_relu(_layer_norm(h))

    # Output head: Linear -> Sigmoid (unpadded output columns)
    y = jnp.dot(h.astype(mm_dtype), w3_ref[...],
                preferred_element_type=jnp.float32)
    y = y + b3_ref[...]
    o_ref[...] = jax.nn.sigmoid(y).astype(o_ref.dtype)


@functools.partial(jax.jit,
                   static_argnames=("block_batch", "matmul_dtype", "out_dtype"))
def acc_library_size_encoder(z, w1, b1, w2, b2, w3, b3,
                             *, block_batch=4096,
                             matmul_dtype=jnp.bfloat16,
                             out_dtype=jnp.float32):
    """z: [B, n_input]; weights [in, out]; biases [out]. Returns [B, n_output]."""
    B, n_input = z.shape
    n_hidden = w1.shape[1]
    n_output = w3.shape[1]

    # Biases as (1, N) f32 for clean TPU layout / broadcasting.
    b1 = b1.reshape(1, -1).astype(jnp.float32)
    b2 = b2.reshape(1, -1).astype(jnp.float32)
    b3 = b3.reshape(1, -1).astype(jnp.float32)

    # Batch tile: large (amortize per-step overhead) but capped so the grid
    # keeps >= 8 steps when possible (v7x megacore sharding); multiple of 8.
    tb = min(block_batch, _round_up(max(-(-B // 8), 1), 8))
    tb = max(tb, 8)
    b_pad = _round_up(B, tb)
    if b_pad != B:
        z = jnp.pad(z, ((0, b_pad - B), (0, 0)))   # single f32 pad pass

    # Weights in the MXU operand dtype (tiny, one-time cast in the wrapper).
    w1_c = w1.astype(matmul_dtype)
    w2_c = w2.astype(matmul_dtype)
    w3_c = w3.astype(matmul_dtype)

    grid = (b_pad // tb,)

    w_itemsize = jnp.dtype(matmul_dtype).itemsize
    o_itemsize = jnp.dtype(out_dtype).itemsize
    flops = 2 * b_pad * (n_input * n_hidden + n_hidden * n_hidden
                         + n_hidden * n_output)
    transcendentals = b_pad * (2 + n_output)   # 2 rsqrt/row + sigmoid per col
    bytes_accessed = (b_pad * n_input * 4                     # z (f32)
                      + b_pad * n_output * o_itemsize         # output
                      + (n_input * n_hidden + n_hidden * n_hidden
                         + n_hidden * n_output) * w_itemsize  # weights
                      + (2 * n_hidden + n_output) * 4)        # biases (f32)

    out = pl.pallas_call(
        acc_lib_size_encoder_kernel,
        out_shape=jax.ShapeDtypeStruct((b_pad, n_output), out_dtype),
        grid=grid,
        in_specs=[
            pl.BlockSpec((tb, n_input), lambda i: (i, 0)),          # z tile (f32)
            pl.BlockSpec((n_input, n_hidden), lambda i: (0, 0)),    # W1 resident
            pl.BlockSpec((1, n_hidden), lambda i: (0, 0)),          # b1
            pl.BlockSpec((n_hidden, n_hidden), lambda i: (0, 0)),   # W2
            pl.BlockSpec((1, n_hidden), lambda i: (0, 0)),          # b2
            pl.BlockSpec((n_hidden, n_output), lambda i: (0, 0)),   # W3 (unpadded)
            pl.BlockSpec((1, n_output), lambda i: (0, 0)),          # b3 (unpadded)
        ],
        out_specs=pl.BlockSpec((tb, n_output), lambda i: (i, 0)),
        compiler_params=pltpu.CompilerParams(
            dimension_semantics=("parallel",)),
        cost_estimate=pl.CostEstimate(
            flops=flops,
            transcendentals=transcendentals,
            bytes_accessed=bytes_accessed),
    )(z, w1_c, b1, w2_c, b2, w3_c, b3)

    # Strip batch padding only (no column padding anymore).
    return out[:B]


def _reference(z, w1, b1, w2, b2, w3, b3):
    def ln(h):
        mean = jnp.mean(h, axis=-1, keepdims=True)
        c = h - mean
        var = jnp.mean(c * c, axis=-1, keepdims=True)
        return c * jax.lax.rsqrt(var + LN_EPS)

    h = _leaky_relu(ln(z @ w1 + b1.reshape(1, -1)))
    h = _leaky_relu(ln(h @ w2 + b2.reshape(1, -1)))
    return jax.nn.sigmoid(h @ w3 + b3.reshape(1, -1))


if __name__ == "__main__":
    # Small but representative shapes: n_input=32, n_hidden=128 (module default),
    # n_output=16.  batch=13 deliberately exercises batch-tile padding and a
    # multi-step grid (tb=8 -> 2 grid steps).
    batch, n_input, n_hidden, n_output = 13, 32, 128, 16

    key = jax.random.PRNGKey(0)
    keys = jax.random.split(key, 7)

    def init_w(k, fan_in, fan_out):
        bound = 1.0 / jnp.sqrt(fan_in)
        return jax.random.uniform(k, (fan_in, fan_out), jnp.float32,
                                  minval=-bound, maxval=bound)

    def init_b(k, fan_in, fan_out):
        bound = 1.0 / jnp.sqrt(fan_in)
        return jax.random.uniform(k, (fan_out,), jnp.float32,
                                  minval=-bound, maxval=bound)

    z = jax.random.normal(keys[0], (batch, n_input), jnp.float32)
    w1 = init_w(keys[1], n_input, n_hidden)
    b1 = init_b(keys[2], n_input, n_hidden)
    w2 = init_w(keys[3], n_hidden, n_hidden)
    b2 = init_b(keys[4], n_hidden, n_hidden)
    w3 = init_w(keys[5], n_hidden, n_output)
    b3 = init_b(keys[6], n_hidden, n_output)

    ref = _reference(z, w1, b1, w2, b2, w3, b3)

    # Default fast path: bf16 matmul operands, f32 accumulation/activations.
    out_bf16 = acc_library_size_encoder(z, w1, b1, w2, b2, w3, b3)
    jax.block_until_ready(out_bf16)
    assert out_bf16.shape == (batch, n_output)
    assert jnp.allclose(out_bf16, ref, atol=3e-2, rtol=3e-2), \
        "bf16 kernel mismatch vs reference"

    # f32 path for tighter numerical agreement.
    out_f32 = acc_library_size_encoder(z, w1, b1, w2, b2, w3, b3,
                                       matmul_dtype=jnp.float32)
    jax.block_until_ready(out_f32)
    assert jnp.allclose(out_f32, ref, atol=1e-4, rtol=1e-4), \
        "f32 kernel mismatch vs reference"

    # Optional bf16-output path (halves writeback bytes; biggest win on v5e).
    out_bf16_o = acc_library_size_encoder(z, w1, b1, w2, b2, w3, b3,
                                          out_dtype=jnp.bfloat16)
    jax.block_until_ready(out_bf16_o)
    assert out_bf16_o.dtype == jnp.bfloat16
    assert jnp.allclose(out_bf16_o.astype(jnp.float32), ref,
                        atol=4e-2, rtol=4e-2), \
        "bf16-output kernel mismatch vs reference"

    print("KERNEL_OK")
</pallas_src>

<mosaic_0001>
module attributes {stable_mosaic.version = 11 : i64} {
  func.func @acc_lib_size_encoder_kernel(%arg0: i32, %arg1: memref<8x32xf32, #tpu.memory_space<vmem>>, %arg2: memref<32x128xbf16, #tpu.memory_space<vmem>>, %arg3: memref<1x128xf32, #tpu.memory_space<vmem>>, %arg4: memref<128x128xbf16, #tpu.memory_space<vmem>>, %arg5: memref<1x128xf32, #tpu.memory_space<vmem>>, %arg6: memref<128x16xbf16, #tpu.memory_space<vmem>>, %arg7: memref<1x16xf32, #tpu.memory_space<vmem>>, %arg8: memref<8x16xf32, #tpu.memory_space<vmem>>) attributes {dimension_semantics = [#tpu.dimension_semantics<parallel>], iteration_bounds = array<i64: 2>, scalar_prefetch = 0 : i64, scratch_operands = 0 : i64, tpu.core_type = #tpu.core_type<tc>, window_params = [{transform_indices = @transform_0, window_bounds = array<i64: 8, 32>}, {pipeline_mode = #tpu.pipeline_mode<synchronous>, transform_indices = @transform_1, window_bounds = array<i64: 32, 128>}, {pipeline_mode = #tpu.pipeline_mode<synchronous>, transform_indices = @transform_2, window_bounds = array<i64: 1, 128>}, {pipeline_mode = #tpu.pipeline_mode<synchronous>, transform_indices = @transform_3, window_bounds = array<i64: 128, 128>}, {pipeline_mode = #tpu.pipeline_mode<synchronous>, transform_indices = @transform_4, window_bounds = array<i64: 1, 128>}, {pipeline_mode = #tpu.pipeline_mode<synchronous>, transform_indices = @transform_5, window_bounds = array<i64: 128, 16>}, {pipeline_mode = #tpu.pipeline_mode<synchronous>, transform_indices = @transform_6, window_bounds = array<i64: 1, 16>}, {transform_indices = @transform_7, window_bounds = array<i64: 8, 16>}]} {
    %c0 = arith.constant 0 : index
    %c0_0 = arith.constant 0 : index
    %0 = vector.load %arg1[%c0, %c0_0] : memref<8x32xf32, #tpu.memory_space<vmem>>, vector<8x32xf32>
    %1 = arith.truncf %0 : vector<8x32xf32> to vector<8x32xbf16>
    %c0_1 = arith.constant 0 : index
    %c0_2 = arith.constant 0 : index
    %2 = vector.load %arg2[%c0_1, %c0_2] : memref<32x128xbf16, #tpu.memory_space<vmem>>, vector<32x128xbf16>
    %cst = arith.constant dense<0.000000e+00> : vector<8x128xf32>
    %3 = tpu.matmul %1, %2, %cst {dimension_numbers = #tpu.dot_dimension_numbers<[1], [0], [0], [1], [0, 0, 1, 1], [], []>} : vector<8x32xbf16>, vector<32x128xbf16>, vector<8x128xf32> -> vector<8x128xf32>
    %c0_3 = arith.constant 0 : index
    %c0_4 = arith.constant 0 : index
    %4 = vector.load %arg3[%c0_3, %c0_4] : memref<1x128xf32, #tpu.memory_space<vmem>>, vector<1x128xf32>
    %5 = vector.broadcast %4 : vector<1x128xf32> to vector<8x128xf32>
    %6 = arith.addf %3, %5 : vector<8x128xf32>
    %cst_5 = arith.constant dense<0.000000e+00> : vector<8xf32>
    %7 = vector.multi_reduction <add>, %6, %cst_5 [1] : vector<8x128xf32> to vector<8xf32>
    %8 = vector.shape_cast %7 : vector<8xf32> to vector<8x1xf32>
    %cst_6 = arith.constant 1.280000e+02 : f32
    %9 = vector.broadcast %cst_6 : f32 to vector<8x1xf32>
    %10 = arith.divf %8, %9 : vector<8x1xf32>
    %11 = vector.broadcast %10 : vector<8x1xf32> to vector<8x128xf32>
    %12 = arith.subf %6, %11 : vector<8x128xf32>
    %13 = arith.mulf %12, %12 : vector<8x128xf32>
    %cst_7 = arith.constant dense<0.000000e+00> : vector<8xf32>
    %14 = vector.multi_reduction <add>, %13, %cst_7 [1] : vector<8x128xf32> to vector<8xf32>
    %15 = vector.shape_cast %14 : vector<8xf32> to vector<8x1xf32>
    %cst_8 = arith.constant 1.280000e+02 : f32
    %16 = vector.broadcast %cst_8 : f32 to vector<8x1xf32>
    %17 = arith.divf %15, %16 : vector<8x1xf32>
    %cst_9 = arith.constant 9.99999974E-6 : f32
    %18 = vector.broadcast %cst_9 : f32 to vector<8x1xf32>
    %19 = arith.addf %17, %18 : vector<8x1xf32>
    %20 = math.rsqrt %19 : vector<8x1xf32>
    %21 = vector.broadcast %20 : vector<8x1xf32> to vector<8x128xf32>
    %22 = arith.mulf %12, %21 : vector<8x128xf32>
    %cst_10 = arith.constant 0.000000e+00 : f32
    %23 = vector.broadcast %cst_10 : f32 to vector<8x128xf32>
    %24 = arith.cmpf oge, %22, %23 : vector<8x128xf32>
    %cst_11 = arith.constant 0.00999999977 : f32
    %25 = vector.broadcast %cst_11 : f32 to vector<8x128xf32>
    %26 = arith.mulf %25, %22 : vector<8x128xf32>
    %27 = arith.select %24, %22, %26 : vector<8x128xi1>, vector<8x128xf32>
    %28 = arith.truncf %27 : vector<8x128xf32> to vector<8x128xbf16>
    %c0_12 = arith.constant 0 : index
    %c0_13 = arith.constant 0 : index
    %29 = vector.load %arg4[%c0_12, %c0_13] : memref<128x128xbf16, #tpu.memory_space<vmem>>, vector<128x128xbf16>
    %cst_14 = arith.constant dense<0.000000e+00> : vector<8x128xf32>
    %30 = tpu.matmul %28, %29, %cst_14 {dimension_numbers = #tpu.dot_dimension_numbers<[1], [0], [0], [1], [0, 0, 1, 1], [], []>} : vector<8x128xbf16>, vector<128x128xbf16>, vector<8x128xf32> -> vector<8x128xf32>
    %c0_15 = arith.constant 0 : index
    %c0_16 = arith.constant 0 : index
    %31 = vector.load %arg5[%c0_15, %c0_16] : memref<1x128xf32, #tpu.memory_space<vmem>>, vector<1x128xf32>
    %32 = vector.broadcast %31 : vector<1x128xf32> to vector<8x128xf32>
    %33 = arith.addf %30, %32 : vector<8x128xf32>
    %cst_17 = arith.constant dense<0.000000e+00> : vector<8xf32>
    %34 = vector.multi_reduction <add>, %33, %cst_17 [1] : vector<8x128xf32> to vector<8xf32>
    %35 = vector.shape_cast %34 : vector<8xf32> to vector<8x1xf32>
    %cst_18 = arith.constant 1.280000e+02 : f32
    %36 = vector.broadcast %cst_18 : f32 to vector<8x1xf32>
    %37 = arith.divf %35, %36 : vector<8x1xf32>
    %38 = vector.broadcast %37 : vector<8x1xf32> to vector<8x128xf32>
    %39 = arith.subf %33, %38 : vector<8x128xf32>
    %40 = arith.mulf %39, %39 : vector<8x128xf32>
    %cst_19 = arith.constant dense<0.000000e+00> : vector<8xf32>
    %41 = vector.multi_reduction <add>, %40, %cst_19 [1] : vector<8x128xf32> to vector<8xf32>
    %42 = vector.shape_cast %41 : vector<8xf32> to vector<8x1xf32>
    %cst_20 = arith.constant 1.280000e+02 : f32
    %43 = vector.broadcast %cst_20 : f32 to vector<8x1xf32>
    %44 = arith.divf %42, %43 : vector<8x1xf32>
    %cst_21 = arith.constant 9.99999974E-6 : f32
    %45 = vector.broadcast %cst_21 : f32 to vector<8x1xf32>
    %46 = arith.addf %44, %45 : vector<8x1xf32>
    %47 = math.rsqrt %46 : vector<8x1xf32>
    %48 = vector.broadcast %47 : vector<8x1xf32> to vector<8x128xf32>
    %49 = arith.mulf %39, %48 : vector<8x128xf32>
    %cst_22 = arith.constant 0.000000e+00 : f32
    %50 = vector.broadcast %cst_22 : f32 to vector<8x128xf32>
    %51 = arith.cmpf oge, %49, %50 : vector<8x128xf32>
    %cst_23 = arith.constant 0.00999999977 : f32
    %52 = vector.broadcast %cst_23 : f32 to vector<8x128xf32>
    %53 = arith.mulf %52, %49 : vector<8x128xf32>
    %54 = arith.select %51, %49, %53 : vector<8x128xi1>, vector<8x128xf32>
    %55 = arith.truncf %54 : vector<8x128xf32> to vector<8x128xbf16>
    %c0_24 = arith.constant 0 : index
    %c0_25 = arith.constant 0 : index
    %56 = vector.load %arg6[%c0_24, %c0_25] : memref<128x16xbf16, #tpu.memory_space<vmem>>, vector<128x16xbf16>
    %cst_26 = arith.constant dense<0.000000e+00> : vector<8x16xf32>
    %57 = tpu.matmul %55, %56, %cst_26 {dimension_numbers = #tpu.dot_dimension_numbers<[1], [0], [0], [1], [0, 0, 1, 1], [], []>} : vector<8x128xbf16>, vector<128x16xbf16>, vector<8x16xf32> -> vector<8x16xf32>
    %c0_27 = arith.constant 0 : index
    %c0_28 = arith.constant 0 : index
    %58 = vector.load %arg7[%c0_27, %c0_28] : memref<1x16xf32, #tpu.memory_space<vmem>>, vector<1x16xf32>
    %59 = vector.broadcast %58 : vector<1x16xf32> to vector<8x16xf32>
    %60 = arith.addf %57, %59 : vector<8x16xf32>
    %61 = arith.negf %60 : vector<8x16xf32>
    %62 = math.exp %61 : vector<8x16xf32>
    %cst_29 = arith.constant 1.000000e+00 : f32
    %63 = vector.broadcast %cst_29 : f32 to vector<8x16xf32>
    %64 = arith.addf %63, %62 : vector<8x16xf32>
    %65 = arith.divf %63, %64 : vector<8x16xf32>
    %c0_30 = arith.constant 0 : index
    %c0_31 = arith.constant 0 : index
    %66 = vector.load %arg8[%c0_30, %c0_31] : memref<8x16xf32, #tpu.memory_space<vmem>>, vector<8x16xf32>
    tpu.vector_store %arg8[%c0_30, %c0_31], %65 {strides = array<i32>} : memref<8x16xf32, #tpu.memory_space<vmem>>, vector<8x16xf32>,
    return
  }
  func.func @transform_0(%arg0: i32) -> (i32, i32) {
    %c0_i32 = arith.constant 0 : i32
    %c0_i32_0 = arith.constant 0 : i32
    return %arg0, %c0_i32 : i32, i32
  }
  func.func @transform_1(%arg0: i32) -> (i32, i32) {
    %c0_i32 = arith.constant 0 : i32
    %c0_i32_0 = arith.constant 0 : i32
    %c0_i32_1 = arith.constant 0 : i32
    return %c0_i32, %c0_i32_0 : i32, i32
  }
  func.func @transform_2(%arg0: i32) -> (i32, i32) {
    %c0_i32 = arith.constant 0 : i32
    %c0_i32_0 = arith.constant 0 : i32
    %c0_i32_1 = arith.constant 0 : i32
    return %c0_i32, %c0_i32_0 : i32, i32
  }
  func.func @transform_3(%arg0: i32) -> (i32, i32) {
    %c0_i32 = arith.constant 0 : i32
    %c0_i32_0 = arith.constant 0 : i32
    %c0_i32_1 = arith.constant 0 : i32
    return %c0_i32, %c0_i32_0 : i32, i32
  }
  func.func @transform_4(%arg0: i32) -> (i32, i32) {
    %c0_i32 = arith.constant 0 : i32
    %c0_i32_0 = arith.constant 0 : i32
    %c0_i32_1 = arith.constant 0 : i32
    return %c0_i32, %c0_i32_0 : i32, i32
  }
  func.func @transform_5(%arg0: i32) -> (i32, i32) {
    %c0_i32 = arith.constant 0 : i32
    %c0_i32_0 = arith.constant 0 : i32
    %c0_i32_1 = arith.constant 0 : i32
    return %c0_i32, %c0_i32_0 : i32, i32
  }
  func.func @transform_6(%arg0: i32) -> (i32, i32) {
    %c0_i32 = arith.constant 0 : i32
    %c0_i32_0 = arith.constant 0 : i32
    %c0_i32_1 = arith.constant 0 : i32
    return %c0_i32, %c0_i32_0 : i32, i32
  }
  func.func @transform_7(%arg0: i32) -> (i32, i32) {
    %c0_i32 = arith.constant 0 : i32
    %c0_i32_0 = arith.constant 0 : i32
    return %arg0, %c0_i32 : i32, i32
  }
}

</mosaic_0001>

<llo_original>
// kernel: acc_library_size_encoder.1
$region0: #{acc_library_size_encoder.1}
  #allocation0 [shape = 'u32[]', space=smem, size = 0x4, offset = 0x4, fixed_abs, tag = 'smem constant byte address 0x4 - core index']
  #allocation1 [shape = 'u32[144,128]{1,0:T(1,128)}', space=vmem, size = 0x12000, scoped, tag = 'internal scratch']
  %s0 = inlined_call_operand.vmem [shape: f32[16,32], index: 0, kind: input, shape index: {}]
  %s1 = inlined_call_operand.vmem [shape: bf16[32,128], index: 1, kind: input, shape index: {}]
  %s2 = inlined_call_operand.vmem [shape: f32[1,128], index: 2, kind: input, shape index: {}]
  %s3 = inlined_call_operand.vmem [shape: bf16[128,128], index: 3, kind: input, shape index: {}]
  %s4 = inlined_call_operand.vmem [shape: f32[1,128], index: 4, kind: input, shape index: {}]
  %s5 = inlined_call_operand.vmem [shape: bf16[128,16], index: 5, kind: input, shape index: {}]
  %s6 = inlined_call_operand.vmem [shape: f32[1,16], index: 6, kind: input, shape index: {}]
  %s7 = inlined_call_operand.hbm [shape: f32[16,16], index: 7, kind: output, shape index: {}]
  %s8 = sld [smem:[#allocation0]]
  $region61: #{acc_library_size_encoder.1} parent=0
    _
  %s10 = ssub.s32 1, %s8
  %s11 = scalar_select 0, %s10, %s8
  $region1: #{acc_library_size_encoder.1} parent=0
    #allocation2 [shape = 'u8[8192]{0}', space=vmem, size = 0x2000, scoped, tag = 'output window, operand 0']
    #allocation3 [shape = 's32[2]{0}', space=sflag, size = 0x8, scoped, tag = 'scoped memory for acc_library_size_encoder.1']
    %12 = vsyncpa [#allocation3], 0
    %s13 = scalar_lea.sflag [#allocation3], 1
    %14 = vsyncpa %s13, 0
    loop: start=0, step=1, limit=4
    $region2: #{acc_library_size_encoder.1} parent=1 // loop_pre_header
      _
    $region3: #{acc_library_size_encoder.1} parent=1 // loop_header
      %s16 = sphi 0, %s20
      %p17 = scmp.ge.s32.totalorder %s16, 4
      %s26 = sphi 0, %s28
      %s29 = sphi 0, %s26
      %s30 = sphi 0, %s29
      %s46 = sphi 0, %s30
      %s50 = sphi 0, %s50
      %s52 = sphi 0, %s50
      %s53 = sphi 0, %s52
      %s67 = sphi 0, %s53
      %s71 = sphi 0, %s71
      %s73 = sphi 0, %s71
      %s74 = sphi 0, %s73
      %s88 = sphi 0, %s74
      %s92 = sphi 0, %s92
      %s94 = sphi 0, %s92
      %s95 = sphi 0, %s94
      %s109 = sphi 0, %s95
      %s113 = sphi 0, %s113
      %s115 = sphi 0, %s113
      %s116 = sphi 0, %s115
      %s130 = sphi 0, %s116
      %s134 = sphi 0, %s134
      %s136 = sphi 0, %s134
      %s137 = sphi 0, %s136
      %s151 = sphi 0, %s137
      %s155 = sphi 0, %s155
      %s157 = sphi 0, %s155
      %s158 = sphi 0, %s157
      %s172 = sphi 0, %s158
      %s178 = sphi 0, %s180
      %s181 = sphi 0, %s178
      %s182 = sphi 0, %s181
      %s198 = sphi 0, %s182
    $region4: #{acc_library_size_encoder.1} parent=1 // loop_header_branch
      %19 = sbr.rel (%p17) target = $region8
    $region5: #{acc_library_size_encoder.1} parent=1 // loop_body
      %s21 = ssub.s32 %s16, 1
      %s22 = ssub.s32 %s16, 2
      %s23 = sadd.s32 %s16, 1
      %s24 = ssub.s32 %s16, %s23
      %p25 = scmp.eq.s32.totalorder %s24, 0
      %s27 = sadd.s32 %s26, 1
      %s28 = scalar_select %p25, %s26, %s27
      %p31 = pneg %p25
      %p32 = scmp.eq.s32.totalorder %s16, 1
      %p33 = por %p31, %p32
      %p34 = scmp.ne.s32.totalorder %s26, %s29
      %p35 = scmp.eq.s32.totalorder %s16, 0
      %p36 = por %p34, %p35
      %p37 = scmp.ne.s32.totalorder %s26, %s29
      %p38 = scmp.eq.s32.totalorder %s21, 1
      %p39 = por %p37, %p38
      %p40 = scmp.ne.s32.totalorder %s29, %s30
      %p41 = scmp.eq.s32.totalorder %s21, 0
      %p42 = por %p40, %p41
      %p43 = scmp.ne.s32.totalorder %s29, %s30
      %p44 = scmp.eq.s32.totalorder %s22, 1
      %p45 = por %p43, %p44
      %p47 = scmp.ne.s32.totalorder %s30, %s46
      %p48 = scmp.eq.s32.totalorder %s22, 0
      %p49 = por %p47, %p48
      %s51 = sadd.s32 %s50, 1
      %p54 = scmp.eq.s32.totalorder %s16, 1
      %p55 = scmp.ne.s32.totalorder %s50, %s52
      %p56 = scmp.eq.s32.totalorder %s16, 0
      %p57 = por %p55, %p56
      %p58 = scmp.ne.s32.totalorder %s50, %s52
      %p59 = scmp.eq.s32.totalorder %s21, 1
      %p60 = por %p58, %p59
      %p61 = scmp.ne.s32.totalorder %s52, %s53
      %p62 = scmp.eq.s32.totalorder %s21, 0
      %p63 = por %p61, %p62
      %p64 = scmp.ne.s32.totalorder %s52, %s53
      %p65 = scmp.eq.s32.totalorder %s22, 1
      %p66 = por %p64, %p65
      %p68 = scmp.ne.s32.totalorder %s53, %s67
      %p69 = scmp.eq.s32.totalorder %s22, 0
      %p70 = por %p68, %p69
      %s72 = sadd.s32 %s71, 1
      %p75 = scmp.eq.s32.totalorder %s16, 1
      %p76 = scmp.ne.s32.totalorder %s71, %s73
      %p77 = scmp.eq.s32.totalorder %s16, 0
      %p78 = por %p76, %p77
      %p79 = scmp.ne.s32.totalorder %s71, %s73
      %p80 = scmp.eq.s32.totalorder %s21, 1
      %p81 = por %p79, %p80
      %p82 = scmp.ne.s32.totalorder %s73, %s74
      %p83 = scmp.eq.s32.totalorder %s21, 0
      %p84 = por %p82, %p83
      %p85 = scmp.ne.s32.totalorder %s73, %s74
      %p86 = scmp.eq.s32.totalorder %s22, 1
      %p87 = por %p85, %p86
      %p89 = scmp.ne.s32.totalorder %s74, %s88
      %p90 = scmp.eq.s32.totalorder %s22, 0
      %p91 = por %p89, %p90
      %s93 = sadd.s32 %s92, 1
      %p96 = scmp.eq.s32.totalorder %s16, 1
      %p97 = scmp.ne.s32.totalorder %s92, %s94
      %p98 = scmp.eq.s32.totalorder %s16, 0
      %p99 = por %p97, %p98
      %p100 = scmp.ne.s32.totalorder %s92, %s94
      %p101 = scmp.eq.s32.totalorder %s21, 1
      %p102 = por %p100, %p101
      %p103 = scmp.ne.s32.totalorder %s94, %s95
      %p104 = scmp.eq.s32.totalorder %s21, 0
      %p105 = por %p103, %p104
      %p106 = scmp.ne.s32.totalorder %s94, %s95
      %p107 = scmp.eq.s32.totalorder %s22, 1
      %p108 = por %p106, %p107
      %p110 = scmp.ne.s32.totalorder %s95, %s109
      %p111 = scmp.eq.s32.totalorder %s22, 0
      %p112 = por %p110, %p111
      %s114 = sadd.s32 %s113, 1
      %p117 = scmp.eq.s32.totalorder %s16, 1
      %p118 = scmp.ne.s32.totalorder %s113, %s115
      %p119 = scmp.eq.s32.totalorder %s16, 0
      %p120 = por %p118, %p119
      %p121 = scmp.ne.s32.totalorder %s113, %s115
      %p122 = scmp.eq.s32.totalorder %s21, 1
      %p123 = por %p121, %p122
      %p124 = scmp.ne.s32.totalorder %s115, %s116
      %p125 = scmp.eq.s32.totalorder %s21, 0
      %p126 = por %p124, %p125
      %p127 = scmp.ne.s32.totalorder %s115, %s116
      %p128 = scmp.eq.s32.totalorder %s22, 1
      %p129 = por %p127, %p128
      %p131 = scmp.ne.s32.totalorder %s116, %s130
      %p132 = scmp.eq.s32.totalorder %s22, 0
      %p133 = por %p131, %p132
      %s135 = sadd.s32 %s134, 1
      %p138 = scmp.eq.s32.totalorder %s16, 1
      %p139 = scmp.ne.s32.totalorder %s134, %s136
      %p140 = scmp.eq.s32.totalorder %s16, 0
      %p141 = por %p139, %p140
      %p142 = scmp.ne.s32.totalorder %s134, %s136
      %p143 = scmp.eq.s32.totalorder %s21, 1
      %p144 = por %p142, %p143
      %p145 = scmp.ne.s32.totalorder %s136, %s137
      %p146 = scmp.eq.s32.totalorder %s21, 0
      %p147 = por %p145, %p146
      %p148 = scmp.ne.s32.totalorder %s136, %s137
      %p149 = scmp.eq.s32.totalorder %s22, 1
      %p150 = por %p148, %p149
      %p152 = scmp.ne.s32.totalorder %s137, %s151
      %p153 = scmp.eq.s32.totalorder %s22, 0
      %p154 = por %p152, %p153
      %s156 = sadd.s32 %s155, 1
      %p159 = scmp.eq.s32.totalorder %s16, 1
      %p160 = scmp.ne.s32.totalorder %s155, %s157
      %p161 = scmp.eq.s32.totalorder %s16, 0
      %p162 = por %p160, %p161
      %p163 = scmp.ne.s32.totalorder %s155, %s157
      %p164 = scmp.eq.s32.totalorder %s21, 1
      %p165 = por %p163, %p164
      %p166 = scmp.ne.s32.totalorder %s157, %s158
      %p167 = scmp.eq.s32.totalorder %s21, 0
      %p168 = por %p166, %p167
      %p169 = scmp.ne.s32.totalorder %s157, %s158
      %p170 = scmp.eq.s32.totalorder %s22, 1
      %p171 = por %p169, %p170
      %p173 = scmp.ne.s32.totalorder %s158, %s172
      %p174 = scmp.eq.s32.totalorder %s22, 0
      %p175 = por %p173, %p174
      %s176 = ssub.s32 %s16, %s23
      %p177 = scmp.eq.s32.totalorder %s176, 0
      %s179 = sadd.s32 %s178, 1
      %s180 = scalar_select %p177, %s178, %s179
      %p183 = pneg %p177
      %p184 = scmp.eq.s32.totalorder %s16, 1
      %p185 = por %p183, %p184
      %p186 = scmp.ne.s32.totalorder %s178, %s181
      %p187 = scmp.eq.s32.totalorder %s16, 0
      %p188 = por %p186, %p187
      %p189 = scmp.ne.s32.totalorder %s178, %s181
      %p190 = scmp.eq.s32.totalorder %s21, 1
      %p191 = por %p189, %p190
      %p192 = scmp.ne.s32.totalorder %s181, %s182
      %p193 = scmp.eq.s32.totalorder %s21, 0
      %p194 = por %p192, %p193
      %p195 = scmp.ne.s32.totalorder %s181, %s182
      %p196 = scmp.eq.s32.totalorder %s22, 1
      %p197 = por %p195, %p196
      %p199 = scmp.ne.s32.totalorder %s182, %s198
      %p200 = scmp.eq.s32.totalorder %s22, 0
      %p201 = por %p199, %p200
      %p202 = scmp.le.s32.totalorder 1, %s16
      %p203 = scmp.lt.s32.totalorder %s16, 3
      %p204 = pnand %p202, %p203
      %p205 = pneg %p204
      // Predicated region
      $region9: #{acc_library_size_encoder.1} parent=5 // pred_check
        _
      $region10: #{acc_library_size_encoder.1} parent=5 // pred_check_branch
        %207 = sbr.rel (%p204) target = $region12
      $region11: #{acc_library_size_encoder.1} parent=5 // pred_region
        %s208 = ssub.s32 %s16, 1
        // Predicated region
        $region13: #{acc_library_size_encoder.1} parent=11 // pred_check
          %p209 = pneg %p63
        $region14: #{acc_library_size_encoder.1} parent=11 // pred_check_branch
          %211 = sbr.rel (%p209) target = $region16
        $region15: #{acc_library_size_encoder.1} parent=11 // pred_region
          _
        $region16: #{acc_library_size_encoder.1} parent=11 // pred_fallthru
          _
        // Predicated region
        $region17: #{acc_library_size_encoder.1} parent=11 // pred_check
          %p212 = pneg %p84
        $region18: #{acc_library_size_encoder.1} parent=11 // pred_check_branch
          %214 = sbr.rel (%p212) target = $region20
        $region19: #{acc_library_size_encoder.1} parent=11 // pred_region
          _
        $region20: #{acc_library_size_encoder.1} parent=11 // pred_fallthru
          _
        // Predicated region
        $region21: #{acc_library_size_encoder.1} parent=11 // pred_check
          %p215 = pneg %p105
        $region22: #{acc_library_size_encoder.1} parent=11 // pred_check_branch
          %217 = sbr.rel (%p215) target = $region24
        $region23: #{acc_library_size_encoder.1} parent=11 // pred_region
          _
        $region24: #{acc_library_size_encoder.1} parent=11 // pred_fallthru
          _
        // Predicated region
        $region25: #{acc_library_size_encoder.1} parent=11 // pred_check
          %p218 = pneg %p126
        $region26: #{acc_library_size_encoder.1} parent=11 // pred_check_branch
          %220 = sbr.rel (%p218) target = $region28
        $region27: #{acc_library_size_encoder.1} parent=11 // pred_region
          _
        $region28: #{acc_library_size_encoder.1} parent=11 // pred_fallthru
          _
        // Predicated region
        $region29: #{acc_library_size_encoder.1} parent=11 // pred_check
          %p221 = pneg %p147
        $region30: #{acc_library_size_encoder.1} parent=11 // pred_check_branch
          %223 = sbr.rel (%p221) target = $region32
        $region31: #{acc_library_size_encoder.1} parent=11 // pred_region
          _
        $region32: #{acc_library_size_encoder.1} parent=11 // pred_fallthru
          _
        // Predicated region
        $region33: #{acc_library_size_encoder.1} parent=11 // pred_check
          %p224 = pneg %p168
        $region34: #{acc_library_size_encoder.1} parent=11 // pred_check_branch
          %226 = sbr.rel (%p224) target = $region36
        $region35: #{acc_library_size_encoder.1} parent=11 // pred_region
          _
        $region36: #{acc_library_size_encoder.1} parent=11 // pred_fallthru
          _
      $region12: #{acc_library_size_encoder.1} parent=5 // pred_fallthru
        _
      %p227 = scmp.lt.s32.totalorder %s16, 2
      // Predicated region
      $region37: #{acc_library_size_encoder.1} parent=5 // pred_check
        %p228 = pneg %p227
      $region38: #{acc_library_size_encoder.1} parent=5 // pred_check_branch
        %230 = sbr.rel (%p228) target = $region40
      $region39: #{acc_library_size_encoder.1} parent=5 // pred_region
        // Predicated region
        $region41: #{acc_library_size_encoder.1} parent=39 // pred_check
          %p231 = pneg %p36
        $region42: #{acc_library_size_encoder.1} parent=39 // pred_check_branch
          %233 = sbr.rel (%p231) target = $region44
        $region43: #{acc_library_size_encoder.1} parent=39 // pred_region
          %p234 = scmp.lt.s32.totalorder %s16, 1
          %s235 = scalar_select %p234, %s16, 1
          %s236 = smul.addr %s235, 8
          %s237 = scalar_lea.vmem %s0, %s236
        $region44: #{acc_library_size_encoder.1} parent=39 // pred_fallthru
          _
      $region40: #{acc_library_size_encoder.1} parent=5 // pred_fallthru
        _
      %p238 = scmp.le.s32.totalorder 1, %s16
      %p239 = scmp.lt.s32.totalorder %s16, 3
      %p240 = pnand %p238, %p239
      %p241 = pneg %p240
      // Predicated region
      $region45: #{acc_library_size_encoder.1} parent=5 // pred_check
        _
      $region46: #{acc_library_size_encoder.1} parent=5 // pred_check_branch
        %243 = sbr.rel (%p240) target = $region48
      $region47: #{acc_library_size_encoder.1} parent=5 // pred_region
        %s244 = ssub.s32 %s16, 1
        %p245 = scmp.lt.s32.totalorder %s21, 1
        %s246 = scalar_select %p245, %s21, 1
        %s247 = smul.addr %s246, 8
        %s248 = scalar_lea.vmem %s0, %s247
        %p249 = pneg %p42
        %p250 = pneg %p39
        %p251 = pneg %p63
        %p252 = pneg %p60
        %p253 = pneg %p84
        %p254 = pneg %p81
        %p255 = pneg %p105
        %p256 = pneg %p102
        %p257 = pneg %p126
        %p258 = pneg %p123
        %p259 = pneg %p147
        %p260 = pneg %p144
        %p261 = pneg %p168
        %p262 = pneg %p165
        %p263 = pneg %p194
        %p264 = pneg %p191
        %s265 = sand.u32 %s181, 1
        %s266 = scalar_lea.sflag [#allocation3], %s265
        %s267 = sand.u32 %s181, 1
        %s268 = smul.addr %s267, 8
        %s269 = scalar_lea.vmem [#allocation2], %s268
        %p270 = scmp.lt.s32.totalorder %s21, 1
        %s271 = scalar_select %p270, %s21, 1
        %s272 = smul.addr %s271, 8
        %s273 = scalar_lea.vmem %s0, %s272
        %v275 = vld [vmem:[%s273] sm:$0xff]
        %v276 = vpack.c.bf16 %v275, %v275
        %v277 = vld [vmem:[%s1] sm:$0xf]
        %v278 = vld [vmem:[%s1 + $0x4] sm:$0xf]
        %v279 = vld [vmem:[%s1 + $0x8] sm:$0xf]
        %v280 = vld [vmem:[%s1 + $0xc] sm:$0xf]
        %v281 = vld [vmem:[%s2] sm:$0x1]
        %v283 = vlaneseq
        %v284 = vshrl.u32 %v283, 7
        %v285 = vsub.s32 0, %v284
        %v286 = vrot.slane %v281, %v285
        %v292 = vunpack.c.l.b16 %v277
        %v293 = vunpack.c.l.b16 %v278
        %v294 = vunpack.c.l.b16 %v279
        %v295 = vunpack.c.l.b16 %v280
        %v296 = vpack.c.b16 %v293, %v292
        %v297 = vpack.c.b16 %v295, %v294
        %vm300 = vcmask 261120
        %v302 = vsel %vm300, %v276, 0
        %304 = vmatprep.subr.bf16.mxu0 0
        %305 = vmatpush1.bf16.msra.mxu0 %v296
        %306 = vmatprep.subr.bf16.mxu0 0
        %307 = vmatpush1.bf16.msra.mxu0 %v297
        %308 = vmatprep.subr.bf16.mxu0 0
        %309 = vmatpush1.bf16.msra.mxu0 0
        %310 = vmatprep.subr.bf16.mxu0 0
        %311 = vmatpush1.bf16.msra.mxu0 0
        %312 = vmatprep.subr.bf16.mxu0 0
        %313 = vmatpush1.bf16.msra.mxu0 0
        %314 = vmatprep.subr.bf16.mxu0 0
        %315 = vmatpush1.bf16.msra.mxu0 0
        %316 = vmatprep.subr.bf16.mxu0 0
        %317 = vmatpush1.bf16.msra.mxu0 0
        %318 = vmatprep.subr.bf16.mxu0 0
        %319 = vmatpush1.bf16.msra.mxu0 0
        %320 = vmatprep.subr.bf16.mxu0 0
        %321 = vmatpush1.bf16.msra.mxu0 0
        %322 = vmatprep.subr.bf16.mxu0 0
        %323 = vmatpush1.bf16.msra.mxu0 0
        %324 = vmatprep.subr.bf16.mxu0 0
        %325 = vmatpush1.bf16.msra.mxu0 0
        %326 = vmatprep.subr.bf16.mxu0 0
        %327 = vmatpush1.bf16.msra.mxu0 0
        %328 = vmatprep.subr.bf16.mxu0 0
        %329 = vmatpush1.bf16.msra.mxu0 0
        %330 = vmatprep.subr.bf16.mxu0 0
        %331 = vmatpush1.bf16.msra.mxu0 0
        %332 = vmatprep.subr.bf16.mxu0 0
        %333 = vmatpush1.bf16.msra.mxu0 0
        %334 = vmatprep.subr.bf16.mxu0 0
        %335 = vmatpush1.bf16.msra.mxu0 0
        %336 = vmatprep.mubr.bf16.mxu0 0
        %337 = vmatmul.mubr.bf16.gmra.mrb[0].mxu0 %v302
        %v338 = vpop.f32.mrb[0].mxu0
        %v339 = vadd.f32 %v286, %v338
        %v340 = vpop.f32.mrb[0].mxu0
        %v341 = vpop.f32.mrb[0].mxu0
        %v342 = vpop.f32.mrb[0].mxu0
        %343 = vdwg.mxu0
        %344 = vadd.xlane.f32.xlu0 %v339
        %v345 = vpop.xlane.xlu0 %344
        %v346 = vrcp.pop 128.0
        %v347 = vmul.f32 %v345, %v346
        %v348 = vsub.f32 %v339, %v347
        %v349 = vmul.f32 %v348, %v348
        %350 = vadd.xlane.f32.xlu0 %v349
        %v351 = vpop.xlane.xlu0 %350
        %v352 = vmul.f32 %v351, %v346
        %v353 = vadd.f32 %v352, 1e-05
        %v354 = vrsqrt.pop %v353
        %v355 = vmul.f32 %v348, %v354
        %vm356 = vcmp.ge.f32.partialorder %v355, 0.0
        %v357 = vmul.f32 %v355, 0.01
        %v358 = vsel %vm356, %v355, %v357
        %v359 = vpack.c.bf16 %v358, %v358
        %v360 = vld [vmem:[%s3] sm:$0xf]
        %v361 = vld [vmem:[%s3 + $0x4] sm:$0xf]
        %v362 = vld [vmem:[%s3 + $0x8] sm:$0xf]
        %v363 = vld [vmem:[%s3 + $0xc] sm:$0xf]
        %v364 = vld [vmem:[%s3 + $0x10] sm:$0xf]
        %v365 = vld [vmem:[%s3 + $0x14] sm:$0xf]
        %v366 = vld [vmem:[%s3 + $0x18] sm:$0xf]
        %v367 = vld [vmem:[%s3 + $0x1c] sm:$0xf]
        %v368 = vld [vmem:[%s3 + $0x20] sm:$0xf]
        %v369 = vld [vmem:[%s3 + $0x24] sm:$0xf]
        %v370 = vld [vmem:[%s3 + $0x28] sm:$0xf]
        %v371 = vld [vmem:[%s3 + $0x2c] sm:$0xf]
        %v372 = vld [vmem:[%s3 + $0x30] sm:$0xf]
        %v373 = vld [vmem:[%s3 + $0x34] sm:$0xf]
        %v374 = vld [vmem:[%s3 + $0x38] sm:$0xf]
        %v375 = vld [vmem:[%s3 + $0x3c] sm:$0xf]
        %v376 = vld [vmem:[%s4] sm:$0x1]
        %v378 = vlaneseq
        %v379 = vshrl.u32 %v378, 7
        %v380 = vsub.s32 0, %v379
        %v381 = vrot.slane %v376, %v380
        %v399 = vunpack.c.l.b16 %v360
        %v400 = vunpack.c.l.b16 %v361
        %v401 = vunpack.c.l.b16 %v362
        %v402 = vunpack.c.l.b16 %v363
        %v403 = vunpack.c.l.b16 %v364
        %v404 = vunpack.c.l.b16 %v365
        %v405 = vunpack.c.l.b16 %v366
        %v406 = vunpack.c.l.b16 %v367
        %v407 = vunpack.c.l.b16 %v368
        %v408 = vunpack.c.l.b16 %v369
        %v409 = vunpack.c.l.b16 %v370
        %v410 = vunpack.c.l.b16 %v371
        %v411 = vunpack.c.l.b16 %v372
        %v412 = vunpack.c.l.b16 %v373
        %v413 = vunpack.c.l.b16 %v374
        %v414 = vunpack.c.l.b16 %v375
        %v415 = vpack.c.b16 %v400, %v399
        %v416 = vpack.c.b16 %v402, %v401
        %v417 = vpack.c.b16 %v404, %v403
        %v418 = vpack.c.b16 %v406, %v405
        %v419 = vpack.c.b16 %v408, %v407
        %v420 = vpack.c.b16 %v410, %v409
        %v421 = vpack.c.b16 %v412, %v411
        %v422 = vpack.c.b16 %v414, %v413
        %431 = vmatprep.subr.bf16.mxu0 0
        %432 = vmatpush1.bf16.msra.mxu0 %v415
        %433 = vmatprep.subr.bf16.mxu0 0
        %434 = vmatpush1.bf16.msra.mxu0 %v416
        %435 = vmatprep.subr.bf16.mxu0 0
        %436 = vmatpush1.bf16.msra.mxu0 %v417
        %437 = vmatprep.subr.bf16.mxu0 0
        %438 = vmatpush1.bf16.msra.mxu0 %v418
        %439 = vmatprep.subr.bf16.mxu0 0
        %440 = vmatpush1.bf16.msra.mxu0 %v419
        %441 = vmatprep.subr.bf16.mxu0 0
        %442 = vmatpush1.bf16.msra.mxu0 %v420
        %443 = vmatprep.subr.bf16.mxu0 0
        %444 = vmatpush1.bf16.msra.mxu0 %v421
        %445 = vmatprep.subr.bf16.mxu0 0
        %446 = vmatpush1.bf16.msra.mxu0 %v422
        %447 = vmatprep.subr.bf16.mxu0 0
        %448 = vmatpush1.bf16.msra.mxu0 0
        %449 = vmatprep.subr.bf16.mxu0 0
        %450 = vmatpush1.bf16.msra.mxu0 0
        %451 = vmatprep.subr.bf16.mxu0 0
        %452 = vmatpush1.bf16.msra.mxu0 0
        %453 = vmatprep.subr.bf16.mxu0 0
        %454 = vmatpush1.bf16.msra.mxu0 0
        %455 = vmatprep.subr.bf16.mxu0 0
        %456 = vmatpush1.bf16.msra.mxu0 0
        %457 = vmatprep.subr.bf16.mxu0 0
        %458 = vmatpush1.bf16.msra.mxu0 0
        %459 = vmatprep.subr.bf16.mxu0 0
        %460 = vmatpush1.bf16.msra.mxu0 0
        %461 = vmatprep.subr.bf16.mxu0 0
        %462 = vmatpush1.bf16.msra.mxu0 0
        %463 = vmatprep.mubr.bf16.mxu0 0
        %464 = vmatmul.mubr.bf16.gmra.mrb[0].mxu0 %v359
        %v465 = vpop.f32.mrb[0].mxu0
        %v466 = vadd.f32 %v381, %v465
        %v467 = vpop.f32.mrb[0].mxu0
        %v468 = vpop.f32.mrb[0].mxu0
        %v469 = vpop.f32.mrb[0].mxu0
        %470 = vdwg.mxu0
        %471 = vadd.xlane.f32.xlu0 %v466
        %v472 = vpop.xlane.xlu0 %471
        %v473 = vmul.f32 %v472, %v346
        %v474 = vsub.f32 %v466, %v473
        %v475 = vmul.f32 %v474, %v474
        %476 = vadd.xlane.f32.xlu0 %v475
        %v477 = vpop.xlane.xlu0 %476
        %v478 = vmul.f32 %v477, %v346
        %v479 = vadd.f32 %v478, 1e-05
        %v480 = vrsqrt.pop %v479
        %v481 = vmul.f32 %v474, %v480
        %vm482 = vcmp.ge.f32.partialorder %v481, 0.0
        %v483 = vmul.f32 %v481, 0.01
        %v484 = vsel %vm482, %v481, %v483
        %v485 = vpack.c.bf16 %v484, %v484
        %v486 = vld [vmem:[%s5] sm:$0xf]
        %v487 = vld [vmem:[%s5 + $0x4] sm:$0xf]
        %v488 = vld [vmem:[%s5 + $0x8] sm:$0xf]
        %v489 = vld [vmem:[%s5 + $0xc] sm:$0xf]
        %v490 = vld [vmem:[%s5 + $0x10] sm:$0xf]
        %v491 = vld [vmem:[%s5 + $0x14] sm:$0xf]
        %v492 = vld [vmem:[%s5 + $0x18] sm:$0xf]
        %v493 = vld [vmem:[%s5 + $0x1c] sm:$0xf]
        %v494 = vld [vmem:[%s5 + $0x20] sm:$0xf]
        %v495 = vld [vmem:[%s5 + $0x24] sm:$0xf]
        %v496 = vld [vmem:[%s5 + $0x28] sm:$0xf]
        %v497 = vld [vmem:[%s5 + $0x2c] sm:$0xf]
        %v498 = vld [vmem:[%s5 + $0x30] sm:$0xf]
        %v499 = vld [vmem:[%s5 + $0x34] sm:$0xf]
        %v500 = vld [vmem:[%s5 + $0x38] sm:$0xf]
        %v501 = vld [vmem:[%s5 + $0x3c] sm:$0xf]
        %v502 = vld [vmem:[%s6] sm:$0x1]
        %v504 = vlaneseq
        %v505 = vshrl.u32 %v504, 7
        %v506 = vsub.s32 0, %v505
        %v507 = vrot.slane %v502, %v506
        %v525 = vunpack.c.l.b16 %v486
        %v526 = vunpack.c.l.b16 %v487
        %v527 = vunpack.c.l.b16 %v488
        %v528 = vunpack.c.l.b16 %v489
        %v529 = vunpack.c.l.b16 %v490
        %v530 = vunpack.c.l.b16 %v491
        %v531 = vunpack.c.l.b16 %v492
        %v532 = vunpack.c.l.b16 %v493
        %v533 = vunpack.c.l.b16 %v494
        %v534 = vunpack.c.l.b16 %v495
        %v535 = vunpack.c.l.b16 %v496
        %v536 = vunpack.c.l.b16 %v497
        %v537 = vunpack.c.l.b16 %v498
        %v538 = vunpack.c.l.b16 %v499
        %v539 = vunpack.c.l.b16 %v500
        %v540 = vunpack.c.l.b16 %v501
        %v541 = vpack.c.b16 %v526, %v525
        %v542 = vpack.c.b16 %v528, %v527
        %v543 = vpack.c.b16 %v530, %v529
        %v544 = vpack.c.b16 %v532, %v531
        %v545 = vpack.c.b16 %v534, %v533
        %v546 = vpack.c.b16 %v536, %v535
        %v547 = vpack.c.b16 %v538, %v537
        %v548 = vpack.c.b16 %v540, %v539
        %557 = vmatprep.subr.bf16.mxu0 0
        %558 = vmatpush1.bf16.msra.mxu0 %v541
        %559 = vmatprep.subr.bf16.mxu0 0
        %560 = vmatpush1.bf16.msra.mxu0 %v542
        %561 = vmatprep.subr.bf16.mxu0 0
        %562 = vmatpush1.bf16.msra.mxu0 %v543
        %563 = vmatprep.subr.bf16.mxu0 0
        %564 = vmatpush1.bf16.msra.mxu0 %v544
        %565 = vmatprep.subr.bf16.mxu0 0
        %566 = vmatpush1.bf16.msra.mxu0 %v545
        %567 = vmatprep.subr.bf16.mxu0 0
        %568 = vmatpush1.bf16.msra.mxu0 %v546
        %569 = vmatprep.subr.bf16.mxu0 0
        %570 = vmatpush1.bf16.msra.mxu0 %v547
        %571 = vmatprep.subr.bf16.mxu0 0
        %572 = vmatpush1.bf16.msra.mxu0 %v548
        %573 = vmatprep.subr.bf16.mxu0 0
        %574 = vmatpush1.bf16.msra.mxu0 0
        %575 = vmatprep.subr.bf16.mxu0 0
        %576 = vmatpush1.bf16.msra.mxu0 0
        %577 = vmatprep.subr.bf16.mxu0 0
        %578 = vmatpush1.bf16.msra.mxu0 0
        %579 = vmatprep.subr.bf16.mxu0 0
        %580 = vmatpush1.bf16.msra.mxu0 0
        %581 = vmatprep.subr.bf16.mxu0 0
        %582 = vmatpush1.bf16.msra.mxu0 0
        %583 = vmatprep.subr.bf16.mxu0 0
        %584 = vmatpush1.bf16.msra.mxu0 0
        %585 = vmatprep.subr.bf16.mxu0 0
        %586 = vmatpush1.bf16.msra.mxu0 0
        %587 = vmatprep.subr.bf16.mxu0 0
        %588 = vmatpush1.bf16.msra.mxu0 0
        %589 = vmatprep.mubr.bf16.mxu0 0
        %590 = vmatmul.mubr.bf16.gmra.mrb[0].mxu0 %v485
        %v591 = vpop.f32.mrb[0].mxu0
        %v592 = vadd.f32 %v507, %v591
        %v593 = vpop.f32.mrb[0].mxu0
        %v594 = vpop.f32.mrb[0].mxu0
        %v595 = vpop.f32.mrb[0].mxu0
        %596 = vdwg.mxu0
        %v597 = vxor.u32 %v592, 2147483648
        %v598 = vmul.f32 %v597, 1.442695
        %v599 = vpow.pop %v598
        %v600 = vadd.f32 %v599, 1.0
        %v601 = vrcp.pop %v600
        %v602 = vmul.f32 1.0, %v601
        %vm603 = vcmask 130048
        %604 = vst.msk [vmem:[%s269] sm:$0xff] %vm603, %v602
        %s605 = sand.u32 %s181, 1
        %s606 = scalar_lea.sflag [#allocation3], %s605
        %s607 = sand.u32 %s181, 1
        %s608 = smul.addr %s607, 8
        %s609 = scalar_lea.vmem [#allocation2], %s608
        // Predicated region
        $region49: #{acc_library_size_encoder.1} parent=47 // pred_check
          %p610 = pneg %p191
        $region50: #{acc_library_size_encoder.1} parent=47 // pred_check_branch
          %612 = sbr.rel (%p610) target = $region52
        $region51: #{acc_library_size_encoder.1} parent=47 // pred_region
          %s614 = ssub.s32 128, 128
          %615 = vsyncadd %s606, %s614
          %s616 = smul.addr %s21, 128
          %s617 = scalar_lea.hbm %s7, %s616
          %s619 = sshll.u32 %s609, 4
          %s620 = int_to_ptr.vmem [resolvable:$true] %s619
          %622 = dma.vmem_to_hbm [thread:$0]  %s620, 128, %s617, %s606
        $region52: #{acc_library_size_encoder.1} parent=47 // pred_fallthru
          _
      $region48: #{acc_library_size_encoder.1} parent=5 // pred_fallthru
        _
      %p623 = scmp.le.s32.totalorder 2, %s16
      // Predicated region
      $region53: #{acc_library_size_encoder.1} parent=5 // pred_check
        %p624 = pneg %p623
      $region54: #{acc_library_size_encoder.1} parent=5 // pred_check_branch
        %626 = sbr.rel (%p624) target = $region56
      $region55: #{acc_library_size_encoder.1} parent=5 // pred_region
        %s627 = ssub.s32 %s16, 2
        // Predicated region
        $region57: #{acc_library_size_encoder.1} parent=55 // pred_check
          %p628 = pneg %p197
        $region58: #{acc_library_size_encoder.1} parent=55 // pred_check_branch
          %630 = sbr.rel (%p628) target = $region60
        $region59: #{acc_library_size_encoder.1} parent=55 // pred_region
          %s631 = sand.u32 %s182, 1
          %s632 = scalar_lea.sflag [#allocation3], %s631
          %s633 = sand.u32 %s182, 1
          %s634 = smul.addr %s633, 8
          %s635 = scalar_lea.vmem [#allocation2], %s634
          %636 = dma.done %s632, 128
        $region60: #{acc_library_size_encoder.1} parent=55 // pred_fallthru
          _
      $region56: #{acc_library_size_encoder.1} parent=5 // pred_fallthru
        _
    $region6: #{acc_library_size_encoder.1} parent=1 // loop_footer
      %s20 = sadd.s32 1, %s16
    $region7: #{acc_library_size_encoder.1} parent=1 // loop_footer_branch
      %15 = sbr.rel target = $region3
    $region8: #{acc_library_size_encoder.1} parent=1 // loop_exit
      _
    %637 = vsyncpa [#allocation3], 1
    %s638 = scalar_lea.sflag [#allocation3], 1
    %639 = vsyncpa %s638, 1

</llo_original>
